<compile_context>
chip_gen: v7x
topology: tpu7x:2x2x1
jax: 0.10.0
libtpu: 0.0.40
codegen_flags: <defaults>
</compile_context>

<pallas_src>
import functools

import jax
import jax.numpy as jnp
from jax.experimental import pallas as pl
from jax.experimental.pallas import tpu as pltpu

KSIZE = 7
PAD = 3


def _shifted_views(segs, shift, length):
    """Shifted view of each batch segment, zero-filled at segment boundaries.

    segs: list of (rows, L) register values (one per batch element).
    Returns (rows, nb*L) with view[:, b*L + t] = seg_b[:, t + shift]
    (0 when t + shift is outside [0, L) -- the conv's zero padding).
    """
    out = []
    for seg in segs:
        rows = seg.shape[0]
        if shift == 0:
            out.append(seg)
        elif shift < 0:
            z = jnp.zeros((rows, -shift), seg.dtype)
            out.append(jnp.concatenate([z, seg[:, :length + shift]], axis=-1))
        else:
            z = jnp.zeros((rows, shift), seg.dtype)
            out.append(jnp.concatenate([seg[:, shift:], z], axis=-1))
    return out[0] if len(out) == 1 else jnp.concatenate(out, axis=-1)


def _im2col(segs, length):
    """Stack the KSIZE shifted views tap-major along the sublane axis.

    Row k*rows + ci at lane b*L + t equals seg_b[ci, t + k - PAD] (zero
    outside [0, L)) -- i.e. the zero-padded conv's im2col slab, built entirely
    in registers (lane shifts hit the XLU; no VMEM staging, no vst traffic).
    """
    views = [_shifted_views(segs, k - PAD, length) for k in range(KSIZE)]
    return jnp.concatenate(views, axis=0)


def _block_kernel(x_ref, w1_ref, w2_ref, b1_ref, b2_ref, out_ref,
                  *, nb, length):
    """One block of `nb` batch elements of BasicBlock1d.

    x_ref  : (nb, C, L)          unpadded input block
    w1_ref : (planes, 7*C)       conv1 weight, tap-major, BN1 scale folded
    w2_ref : (planes, 7*planes)  conv2 weight, tap-major, BN2 scale folded
    b1/b2  : (planes, 1)         folded BN shifts (f32)
    out_ref: (nb, planes, L)
    """
    L = length

    # Per-batch-element views of the input block.
    xsegs = [x_ref[b] for b in range(nb)]
    # Batch-stacked input (the residual), lanes = nb*L.
    xs = xsegs[0] if nb == 1 else jnp.concatenate(xsegs, axis=-1)

    # ---- conv1 as ONE MXU matmul (K = 7*C) + folded BN1 shift + ReLU -------
    h = jnp.dot(w1_ref[...], _im2col(xsegs, L),
                preferred_element_type=jnp.float32)
    h = jnp.maximum(h + b1_ref[...], 0.0)
    # dropout(p=0.2): identity in eval mode.

    # ---- conv2 directly from the in-register intermediate ------------------
    hc = h.astype(x_ref.dtype)
    hsegs = [hc] if nb == 1 else [hc[:, b * L:(b + 1) * L] for b in range(nb)]
    o = jnp.dot(w2_ref[...], _im2col(hsegs, L),
                preferred_element_type=jnp.float32)

    # BN2 shift + residual (downsample is None => residual = x) + ReLU.
    o = jnp.maximum(o + b2_ref[...] + xs.astype(jnp.float32), 0.0)

    # ---- lane-aligned per-batch-element output stores -----------------------
    o = o.astype(out_ref.dtype)
    for b in range(nb):
        out_ref[b] = o[:, b * L:(b + 1) * L]


def _pick_batch_block(n, max_nb=8):
    """Largest divisor of n that is <= max_nb AND leaves >= 2 grid steps,
    so the BlockSpec pipeline can overlap HBM DMA with compute and a v7x
    megacore gets work on both TensorCores.  Falls back to 1."""
    cap = max(1, min(max_nb, n // 2))
    nb = 1
    for d in range(1, cap + 1):
        if n % d == 0:
            nb = d
    return nb


def basic_block_1d(x, w1, w2, bn1, bn2, eps=1e-5, compute_dtype=None,
                   max_batch_block=8):
    """x: (N, C, L).  w1: (planes, C, 7), w2: (planes, planes, 7).

    bn1/bn2: dicts with 'gamma', 'beta', 'mean', 'var' of shape (planes,).
    Eval-mode semantics (BN running stats, identity dropout).
    Returns (N, planes, L) in `compute_dtype` (default: x.dtype; bfloat16 is
    recommended on v6e/v7x).  Requires planes == C (downsample is None).
    """
    N, C, L = x.shape
    planes = w1.shape[0]
    assert planes == C, "downsample=None requires inplanes == planes"
    if compute_dtype is None:
        compute_dtype = x.dtype
    compute_dtype = jnp.dtype(compute_dtype)

    nb = _pick_batch_block(N, max_batch_block)

    # No HBM-side padding: x is passed unpadded; the conv halo is handled
    # inside the kernel.  Cast activations once.
    xc = x.astype(compute_dtype)

    def fold(bn):
        scale = (bn["gamma"] / jnp.sqrt(bn["var"] + eps)).astype(jnp.float32)
        shift = bn["beta"].astype(jnp.float32) - bn["mean"].astype(jnp.float32) * scale
        return scale, shift

    s1, b1 = fold(bn1)
    s2, b2 = fold(bn2)

    # Tap-major packed weights with BN scale folded in:
    #   wp[co, k*Cin + ci] = scale[co] * w[co, ci, k]
    def pack(w, scale):
        p, cin, k = w.shape
        wp = jnp.transpose(w, (0, 2, 1)).reshape(p, k * cin).astype(jnp.float32)
        return (wp * scale[:, None]).astype(compute_dtype)

    w1p = pack(w1, s1)                       # (planes, 7*C)
    w2p = pack(w2, s2)                       # (planes, 7*planes)
    b1c = b1.reshape(planes, 1)
    b2c = b2.reshape(planes, 1)

    kernel = functools.partial(_block_kernel, nb=nb, length=L)

    itemsize = compute_dtype.itemsize
    flops = 2 * N * L * KSIZE * (planes * C + planes * planes)
    bytes_accessed = (N * C * L * itemsize            # input (unpadded now)
                      + N * planes * L * itemsize     # output
                      + (w1p.size + w2p.size) * itemsize
                      + (b1c.size + b2c.size) * 4)

    return pl.pallas_call(
        kernel,
        out_shape=jax.ShapeDtypeStruct((N, planes, L), compute_dtype),
        grid=(N // nb,),
        in_specs=[
            pl.BlockSpec((nb, C, L), lambda g: (g, 0, 0)),               # x
            pl.BlockSpec((planes, KSIZE * C), lambda g: (0, 0)),         # w1p
            pl.BlockSpec((planes, KSIZE * planes), lambda g: (0, 0)),    # w2p
            pl.BlockSpec((planes, 1), lambda g: (0, 0)),                 # b1
            pl.BlockSpec((planes, 1), lambda g: (0, 0)),                 # b2
        ],
        out_specs=pl.BlockSpec((nb, planes, L), lambda g: (g, 0, 0)),
        compiler_params=pltpu.CompilerParams(
            dimension_semantics=("parallel",)),
        cost_estimate=pl.CostEstimate(flops=int(flops), transcendentals=0,
                                      bytes_accessed=int(bytes_accessed)),
    )(xc, w1p, w2p, b1c, b2c)


def _reference(x, w1, w2, bn1, bn2, eps=1e-5):
    """Pure-JAX reference (eval-mode BN, identity dropout), full f32 precision."""
    def conv1d(inp, w):
        return jax.lax.conv_general_dilated(
            inp, w, window_strides=(1,), padding=((PAD, PAD),),
            dimension_numbers=("NCH", "OIH", "NCH"),
            precision=jax.lax.Precision.HIGHEST)

    def bn(o, p):
        scale = p["gamma"] / jnp.sqrt(p["var"] + eps)
        shift = p["beta"] - p["mean"] * scale
        return o * scale[None, :, None] + shift[None, :, None]

    out = jnp.maximum(bn(conv1d(x, w1), bn1), 0.0)
    out = bn(conv1d(out, w2), bn2)
    return jnp.maximum(out + x, 0.0)


if __name__ == "__main__":
    key = jax.random.PRNGKey(0)
    N, C, L = 2, 8, 128          # batch, inplanes == planes, sequence length
    planes = C

    ks = jax.random.split(key, 11)
    x = jax.random.normal(ks[0], (N, C, L), dtype=jnp.float32)
    w1 = jax.random.normal(ks[1], (planes, C, KSIZE), dtype=jnp.float32) * 0.1
    w2 = jax.random.normal(ks[2], (planes, planes, KSIZE), dtype=jnp.float32) * 0.1
    bn1 = {
        "gamma": 1.0 + 0.1 * jax.random.normal(ks[3], (planes,), jnp.float32),
        "beta": 0.1 * jax.random.normal(ks[4], (planes,), jnp.float32),
        "mean": 0.1 * jax.random.normal(ks[5], (planes,), jnp.float32),
        "var": jnp.abs(jax.random.normal(ks[6], (planes,), jnp.float32)) + 0.5,
    }
    bn2 = {
        "gamma": 1.0 + 0.1 * jax.random.normal(ks[7], (planes,), jnp.float32),
        "beta": 0.1 * jax.random.normal(ks[8], (planes,), jnp.float32),
        "mean": 0.1 * jax.random.normal(ks[9], (planes,), jnp.float32),
        "var": jnp.abs(jax.random.normal(ks[10], (planes,), jnp.float32)) + 0.5,
    }

    ref = _reference(x, w1, w2, bn1, bn2)

    # float32 path.  Tolerance accommodates TPU default (non-HIGHEST) matmul
    # precision plus the BN-scale-folded weight rounding; structural bugs would
    # produce errors orders of magnitude larger.
    out = basic_block_1d(x, w1, w2, bn1, bn2)
    out = jax.block_until_ready(out)
    assert out.shape == (N, planes, L)
    assert jnp.allclose(out, ref, atol=5e-2, rtol=2e-2), \
        float(jnp.max(jnp.abs(out - ref)))

    # bfloat16 activation/weight path (f32 accumulation / BN shifts) — loose
    # check; this is the recommended configuration on v6e/v7x.
    out_bf16 = basic_block_1d(x, w1, w2, bn1, bn2, compute_dtype=jnp.bfloat16)
    out_bf16 = jax.block_until_ready(out_bf16).astype(jnp.float32)
    assert out_bf16.shape == (N, planes, L)
    assert jnp.allclose(out_bf16, ref, atol=2.5e-1, rtol=2.5e-1), \
        float(jnp.max(jnp.abs(out_bf16 - ref)))

    print("KERNEL_OK")
</pallas_src>

<mosaic_0001>
module attributes {stable_mosaic.version = 11 : i64} {
  func.func @_block_kernel(%arg0: i32, %arg1: memref<1x8x128xf32, #tpu.memory_space<vmem>>, %arg2: memref<8x56xf32, #tpu.memory_space<vmem>>, %arg3: memref<8x56xf32, #tpu.memory_space<vmem>>, %arg4: memref<8x1xf32, #tpu.memory_space<vmem>>, %arg5: memref<8x1xf32, #tpu.memory_space<vmem>>, %arg6: memref<1x8x128xf32, #tpu.memory_space<vmem>>) attributes {dimension_semantics = [#tpu.dimension_semantics<parallel>], iteration_bounds = array<i64: 2>, scalar_prefetch = 0 : i64, scratch_operands = 0 : i64, tpu.core_type = #tpu.core_type<tc>, window_params = [{transform_indices = @transform_0, window_bounds = array<i64: 1, 8, 128>}, {pipeline_mode = #tpu.pipeline_mode<synchronous>, transform_indices = @transform_1, window_bounds = array<i64: 8, 56>}, {pipeline_mode = #tpu.pipeline_mode<synchronous>, transform_indices = @transform_2, window_bounds = array<i64: 8, 56>}, {pipeline_mode = #tpu.pipeline_mode<synchronous>, transform_indices = @transform_3, window_bounds = array<i64: 8, 1>}, {pipeline_mode = #tpu.pipeline_mode<synchronous>, transform_indices = @transform_4, window_bounds = array<i64: 8, 1>}, {transform_indices = @transform_5, window_bounds = array<i64: 1, 8, 128>}]} {
    %c0 = arith.constant 0 : index
    %c0_0 = arith.constant 0 : index
    %c0_1 = arith.constant 0 : index
    %0 = vector.load %arg1[%c0, %c0_0, %c0_1] : memref<1x8x128xf32, #tpu.memory_space<vmem>>, vector<1x8x128xf32>
    %1 = vector.shape_cast %0 : vector<1x8x128xf32> to vector<8x128xf32>
    %c0_2 = arith.constant 0 : index
    %c0_3 = arith.constant 0 : index
    %2 = vector.load %arg2[%c0_2, %c0_3] : memref<8x56xf32, #tpu.memory_space<vmem>>, vector<8x56xf32>
    %cst = arith.constant 0.000000e+00 : f32
    %3 = vector.broadcast %cst : f32 to vector<8x3xf32>
    %4 = vector.extract_strided_slice %1 {offsets = [0, 0], sizes = [8, 125], strides = [1, 1]} : vector<8x128xf32> to vector<8x125xf32>
    %5 = tpu.concatenate %3, %4 in 1 : vector<8x3xf32>, vector<8x125xf32> -> vector<8x128xf32>
    %cst_4 = arith.constant 0.000000e+00 : f32
    %6 = vector.broadcast %cst_4 : f32 to vector<8x2xf32>
    %7 = vector.extract_strided_slice %1 {offsets = [0, 0], sizes = [8, 126], strides = [1, 1]} : vector<8x128xf32> to vector<8x126xf32>
    %8 = tpu.concatenate %6, %7 in 1 : vector<8x2xf32>, vector<8x126xf32> -> vector<8x128xf32>
    %cst_5 = arith.constant 0.000000e+00 : f32
    %9 = vector.broadcast %cst_5 : f32 to vector<8x1xf32>
    %10 = vector.extract_strided_slice %1 {offsets = [0, 0], sizes = [8, 127], strides = [1, 1]} : vector<8x128xf32> to vector<8x127xf32>
    %11 = tpu.concatenate %9, %10 in 1 : vector<8x1xf32>, vector<8x127xf32> -> vector<8x128xf32>
    %cst_6 = arith.constant 0.000000e+00 : f32
    %12 = vector.broadcast %cst_6 : f32 to vector<8x1xf32>
    %13 = vector.extract_strided_slice %1 {offsets = [0, 1], sizes = [8, 127], strides = [1, 1]} : vector<8x128xf32> to vector<8x127xf32>
    %14 = tpu.concatenate %13, %12 in 1 : vector<8x127xf32>, vector<8x1xf32> -> vector<8x128xf32>
    %cst_7 = arith.constant 0.000000e+00 : f32
    %15 = vector.broadcast %cst_7 : f32 to vector<8x2xf32>
    %16 = vector.extract_strided_slice %1 {offsets = [0, 2], sizes = [8, 126], strides = [1, 1]} : vector<8x128xf32> to vector<8x126xf32>
    %17 = tpu.concatenate %16, %15 in 1 : vector<8x126xf32>, vector<8x2xf32> -> vector<8x128xf32>
    %cst_8 = arith.constant 0.000000e+00 : f32
    %18 = vector.broadcast %cst_8 : f32 to vector<8x3xf32>
    %19 = vector.extract_strided_slice %1 {offsets = [0, 3], sizes = [8, 125], strides = [1, 1]} : vector<8x128xf32> to vector<8x125xf32>
    %20 = tpu.concatenate %19, %18 in 1 : vector<8x125xf32>, vector<8x3xf32> -> vector<8x128xf32>
    %21 = tpu.concatenate %5, %8, %11, %1, %14, %17, %20 in 0 : vector<8x128xf32>, vector<8x128xf32>, vector<8x128xf32>, vector<8x128xf32>, vector<8x128xf32>, vector<8x128xf32>, vector<8x128xf32> -> vector<56x128xf32>
    %cst_9 = arith.constant dense<0.000000e+00> : vector<8x128xf32>
    %22 = tpu.matmul %2, %21, %cst_9 {dimension_numbers = #tpu.dot_dimension_numbers<[1], [0], [0], [1], [0, 0, 1, 1], [], []>} : vector<8x56xf32>, vector<56x128xf32>, vector<8x128xf32> -> vector<8x128xf32>
    %c0_10 = arith.constant 0 : index
    %c0_11 = arith.constant 0 : index
    %23 = vector.load %arg4[%c0_10, %c0_11] : memref<8x1xf32, #tpu.memory_space<vmem>>, vector<8x1xf32>
    %24 = vector.broadcast %23 : vector<8x1xf32> to vector<8x128xf32>
    %25 = arith.addf %22, %24 : vector<8x128xf32>
    %cst_12 = arith.constant 0.000000e+00 : f32
    %26 = vector.broadcast %cst_12 : f32 to vector<8x128xf32>
    %27 = arith.maximumf %25, %26 : vector<8x128xf32>
    %c0_13 = arith.constant 0 : index
    %c0_14 = arith.constant 0 : index
    %28 = vector.load %arg3[%c0_13, %c0_14] : memref<8x56xf32, #tpu.memory_space<vmem>>, vector<8x56xf32>
    %cst_15 = arith.constant 0.000000e+00 : f32
    %29 = vector.broadcast %cst_15 : f32 to vector<8x3xf32>
    %30 = vector.extract_strided_slice %27 {offsets = [0, 0], sizes = [8, 125], strides = [1, 1]} : vector<8x128xf32> to vector<8x125xf32>
    %31 = tpu.concatenate %29, %30 in 1 : vector<8x3xf32>, vector<8x125xf32> -> vector<8x128xf32>
    %cst_16 = arith.constant 0.000000e+00 : f32
    %32 = vector.broadcast %cst_16 : f32 to vector<8x2xf32>
    %33 = vector.extract_strided_slice %27 {offsets = [0, 0], sizes = [8, 126], strides = [1, 1]} : vector<8x128xf32> to vector<8x126xf32>
    %34 = tpu.concatenate %32, %33 in 1 : vector<8x2xf32>, vector<8x126xf32> -> vector<8x128xf32>
    %cst_17 = arith.constant 0.000000e+00 : f32
    %35 = vector.broadcast %cst_17 : f32 to vector<8x1xf32>
    %36 = vector.extract_strided_slice %27 {offsets = [0, 0], sizes = [8, 127], strides = [1, 1]} : vector<8x128xf32> to vector<8x127xf32>
    %37 = tpu.concatenate %35, %36 in 1 : vector<8x1xf32>, vector<8x127xf32> -> vector<8x128xf32>
    %cst_18 = arith.constant 0.000000e+00 : f32
    %38 = vector.broadcast %cst_18 : f32 to vector<8x1xf32>
    %39 = vector.extract_strided_slice %27 {offsets = [0, 1], sizes = [8, 127], strides = [1, 1]} : vector<8x128xf32> to vector<8x127xf32>
    %40 = tpu.concatenate %39, %38 in 1 : vector<8x127xf32>, vector<8x1xf32> -> vector<8x128xf32>
    %cst_19 = arith.constant 0.000000e+00 : f32
    %41 = vector.broadcast %cst_19 : f32 to vector<8x2xf32>
    %42 = vector.extract_strided_slice %27 {offsets = [0, 2], sizes = [8, 126], strides = [1, 1]} : vector<8x128xf32> to vector<8x126xf32>
    %43 = tpu.concatenate %42, %41 in 1 : vector<8x126xf32>, vector<8x2xf32> -> vector<8x128xf32>
    %cst_20 = arith.constant 0.000000e+00 : f32
    %44 = vector.broadcast %cst_20 : f32 to vector<8x3xf32>
    %45 = vector.extract_strided_slice %27 {offsets = [0, 3], sizes = [8, 125], strides = [1, 1]} : vector<8x128xf32> to vector<8x125xf32>
    %46 = tpu.concatenate %45, %44 in 1 : vector<8x125xf32>, vector<8x3xf32> -> vector<8x128xf32>
    %47 = tpu.concatenate %31, %34, %37, %27, %40, %43, %46 in 0 : vector<8x128xf32>, vector<8x128xf32>, vector<8x128xf32>, vector<8x128xf32>, vector<8x128xf32>, vector<8x128xf32>, vector<8x128xf32> -> vector<56x128xf32>
    %cst_21 = arith.constant dense<0.000000e+00> : vector<8x128xf32>
    %48 = tpu.matmul %28, %47, %cst_21 {dimension_numbers = #tpu.dot_dimension_numbers<[1], [0], [0], [1], [0, 0, 1, 1], [], []>} : vector<8x56xf32>, vector<56x128xf32>, vector<8x128xf32> -> vector<8x128xf32>
    %c0_22 = arith.constant 0 : index
    %c0_23 = arith.constant 0 : index
    %49 = vector.load %arg5[%c0_22, %c0_23] : memref<8x1xf32, #tpu.memory_space<vmem>>, vector<8x1xf32>
    %50 = vector.broadcast %49 : vector<8x1xf32> to vector<8x128xf32>
    %51 = arith.addf %48, %50 : vector<8x128xf32>
    %52 = arith.addf %51, %1 : vector<8x128xf32>
    %cst_24 = arith.constant 0.000000e+00 : f32
    %53 = vector.broadcast %cst_24 : f32 to vector<8x128xf32>
    %54 = arith.maximumf %52, %53 : vector<8x128xf32>
    %c0_25 = arith.constant 0 : index
    %c0_26 = arith.constant 0 : index
    %c0_27 = arith.constant 0 : index
    %55 = vector.load %arg6[%c0_25, %c0_26, %c0_27] : memref<1x8x128xf32, #tpu.memory_space<vmem>>, vector<1x8x128xf32>
    %56 = vector.shape_cast %55 : vector<1x8x128xf32> to vector<8x128xf32>
    %57 = vector.shape_cast %54 : vector<8x128xf32> to vector<1x8x128xf32>
    tpu.vector_store %arg6[%c0_25, %c0_26, %c0_27], %57 {strides = array<i32>} : memref<1x8x128xf32, #tpu.memory_space<vmem>>, vector<1x8x128xf32>,
    return
  }
  func.func @transform_0(%arg0: i32) -> (i32, i32, i32) {
    %c0_i32 = arith.constant 0 : i32
    %c0_i32_0 = arith.constant 0 : i32
    %c0_i32_1 = arith.constant 0 : i32
    return %arg0, %c0_i32, %c0_i32_0 : i32, i32, i32
  }
  func.func @transform_1(%arg0: i32) -> (i32, i32) {
    %c0_i32 = arith.constant 0 : i32
    %c0_i32_0 = arith.constant 0 : i32
    %c0_i32_1 = arith.constant 0 : i32
    return %c0_i32, %c0_i32_0 : i32, i32
  }
  func.func @transform_2(%arg0: i32) -> (i32, i32) {
    %c0_i32 = arith.constant 0 : i32
    %c0_i32_0 = arith.constant 0 : i32
    %c0_i32_1 = arith.constant 0 : i32
    return %c0_i32, %c0_i32_0 : i32, i32
  }
  func.func @transform_3(%arg0: i32) -> (i32, i32) {
    %c0_i32 = arith.constant 0 : i32
    %c0_i32_0 = arith.constant 0 : i32
    %c0_i32_1 = arith.constant 0 : i32
    return %c0_i32, %c0_i32_0 : i32, i32
  }
  func.func @transform_4(%arg0: i32) -> (i32, i32) {
    %c0_i32 = arith.constant 0 : i32
    %c0_i32_0 = arith.constant 0 : i32
    %c0_i32_1 = arith.constant 0 : i32
    return %c0_i32, %c0_i32_0 : i32, i32
  }
  func.func @transform_5(%arg0: i32) -> (i32, i32, i32) {
    %c0_i32 = arith.constant 0 : i32
    %c0_i32_0 = arith.constant 0 : i32
    %c0_i32_1 = arith.constant 0 : i32
    return %arg0, %c0_i32, %c0_i32_0 : i32, i32, i32
  }
}

</mosaic_0001>

<llo_original>
// kernel: tpu_custom_call.1
$region0: #{tpu_custom_call.1}
  #allocation0 [shape = 'u32[]', space=smem, size = 0x4, offset = 0x4, fixed_abs, tag = 'smem constant byte address 0x4 - core index']
  #allocation1 [shape = 'u32[144,128]{1,0:T(1,128)}', space=vmem, size = 0x12000, scoped, tag = 'internal scratch']
  %s0 = inlined_call_operand.vmem [shape: f32[2,8,128], index: 0, kind: input, shape index: {}]
  %s1 = inlined_call_operand.hbm [shape: f32[8,56], index: 1, kind: input, shape index: {}]
  %s2 = inlined_call_operand.vmem [shape: f32[8,56], index: 2, kind: input, shape index: {}]
  %s3 = inlined_call_operand.vmem [shape: f32[8,1], index: 3, kind: input, shape index: {}]
  %s4 = inlined_call_operand.vmem [shape: f32[8,1], index: 4, kind: input, shape index: {}]
  %s5 = inlined_call_operand.hbm [shape: f32[2,8,128], index: 5, kind: output, shape index: {}]
  %s6 = sld [smem:[#allocation0]]
  $region57: #{tpu_custom_call.1} parent=0
    _
  %s8 = ssub.s32 1, %s6
  %s9 = scalar_select 0, %s8, %s6
  $region1: #{tpu_custom_call.1} parent=0
    #allocation2 [shape = 'u8[4096]{0}', space=vmem, size = 0x1000, scoped, tag = 'input window, operand 1, single buffered']
    #allocation3 [shape = 's32[2]{0}', space=sflag, size = 0x8, scoped, tag = 'scoped memory for tpu_custom_call.1']
    #allocation4 [shape = 's32[2]{0}', space=sflag, size = 0x8, scoped, tag = 'scoped memory for tpu_custom_call.1']
    #allocation5 [shape = 'u8[8192]{0}', space=vmem, size = 0x2000, scoped, tag = 'output window, operand 0']
    %10 = vsyncpa [#allocation3], 0
    %11 = vsyncpa [#allocation4], 0
    %s12 = scalar_lea.sflag [#allocation4], 1
    %13 = vsyncpa %s12, 0
    loop: start=0, step=1, limit=4
    $region2: #{tpu_custom_call.1} parent=1 // loop_pre_header
      _
    $region3: #{tpu_custom_call.1} parent=1 // loop_header
      %s15 = sphi 0, %s19
      %p16 = scmp.ge.s32.totalorder %s15, 4
      %s25 = sphi 0, %s27
      %s28 = sphi 0, %s25
      %s29 = sphi 0, %s28
      %s45 = sphi 0, %s29
      %s49 = sphi 0, %s49
      %s51 = sphi 0, %s49
      %s52 = sphi 0, %s51
      %s66 = sphi 0, %s52
      %s70 = sphi 0, %s70
      %s72 = sphi 0, %s70
      %s73 = sphi 0, %s72
      %s87 = sphi 0, %s73
      %s91 = sphi 0, %s91
      %s93 = sphi 0, %s91
      %s94 = sphi 0, %s93
      %s108 = sphi 0, %s94
      %s112 = sphi 0, %s112
      %s114 = sphi 0, %s112
      %s115 = sphi 0, %s114
      %s129 = sphi 0, %s115
      %s135 = sphi 0, %s137
      %s138 = sphi 0, %s135
      %s139 = sphi 0, %s138
      %s155 = sphi 0, %s139
    $region4: #{tpu_custom_call.1} parent=1 // loop_header_branch
      %18 = sbr.rel (%p16) target = $region8
    $region5: #{tpu_custom_call.1} parent=1 // loop_body
      %s20 = ssub.s32 %s15, 1
      %s21 = ssub.s32 %s15, 2
      %s22 = sadd.s32 %s15, 1
      %s23 = ssub.s32 %s15, %s22
      %p24 = scmp.eq.s32.totalorder %s23, 0
      %s26 = sadd.s32 %s25, 1
      %s27 = scalar_select %p24, %s25, %s26
      %p30 = pneg %p24
      %p31 = scmp.eq.s32.totalorder %s15, 1
      %p32 = por %p30, %p31
      %p33 = scmp.ne.s32.totalorder %s25, %s28
      %p34 = scmp.eq.s32.totalorder %s15, 0
      %p35 = por %p33, %p34
      %p36 = scmp.ne.s32.totalorder %s25, %s28
      %p37 = scmp.eq.s32.totalorder %s20, 1
      %p38 = por %p36, %p37
      %p39 = scmp.ne.s32.totalorder %s28, %s29
      %p40 = scmp.eq.s32.totalorder %s20, 0
      %p41 = por %p39, %p40
      %p42 = scmp.ne.s32.totalorder %s28, %s29
      %p43 = scmp.eq.s32.totalorder %s21, 1
      %p44 = por %p42, %p43
      %p46 = scmp.ne.s32.totalorder %s29, %s45
      %p47 = scmp.eq.s32.totalorder %s21, 0
      %p48 = por %p46, %p47
      %s50 = sadd.s32 %s49, 1
      %p53 = scmp.eq.s32.totalorder %s15, 1
      %p54 = scmp.ne.s32.totalorder %s49, %s51
      %p55 = scmp.eq.s32.totalorder %s15, 0
      %p56 = por %p54, %p55
      %p57 = scmp.ne.s32.totalorder %s49, %s51
      %p58 = scmp.eq.s32.totalorder %s20, 1
      %p59 = por %p57, %p58
      %p60 = scmp.ne.s32.totalorder %s51, %s52
      %p61 = scmp.eq.s32.totalorder %s20, 0
      %p62 = por %p60, %p61
      %p63 = scmp.ne.s32.totalorder %s51, %s52
      %p64 = scmp.eq.s32.totalorder %s21, 1
      %p65 = por %p63, %p64
      %p67 = scmp.ne.s32.totalorder %s52, %s66
      %p68 = scmp.eq.s32.totalorder %s21, 0
      %p69 = por %p67, %p68
      %s71 = sadd.s32 %s70, 1
      %p74 = scmp.eq.s32.totalorder %s15, 1
      %p75 = scmp.ne.s32.totalorder %s70, %s72
      %p76 = scmp.eq.s32.totalorder %s15, 0
      %p77 = por %p75, %p76
      %p78 = scmp.ne.s32.totalorder %s70, %s72
      %p79 = scmp.eq.s32.totalorder %s20, 1
      %p80 = por %p78, %p79
      %p81 = scmp.ne.s32.totalorder %s72, %s73
      %p82 = scmp.eq.s32.totalorder %s20, 0
      %p83 = por %p81, %p82
      %p84 = scmp.ne.s32.totalorder %s72, %s73
      %p85 = scmp.eq.s32.totalorder %s21, 1
      %p86 = por %p84, %p85
      %p88 = scmp.ne.s32.totalorder %s73, %s87
      %p89 = scmp.eq.s32.totalorder %s21, 0
      %p90 = por %p88, %p89
      %s92 = sadd.s32 %s91, 1
      %p95 = scmp.eq.s32.totalorder %s15, 1
      %p96 = scmp.ne.s32.totalorder %s91, %s93
      %p97 = scmp.eq.s32.totalorder %s15, 0
      %p98 = por %p96, %p97
      %p99 = scmp.ne.s32.totalorder %s91, %s93
      %p100 = scmp.eq.s32.totalorder %s20, 1
      %p101 = por %p99, %p100
      %p102 = scmp.ne.s32.totalorder %s93, %s94
      %p103 = scmp.eq.s32.totalorder %s20, 0
      %p104 = por %p102, %p103
      %p105 = scmp.ne.s32.totalorder %s93, %s94
      %p106 = scmp.eq.s32.totalorder %s21, 1
      %p107 = por %p105, %p106
      %p109 = scmp.ne.s32.totalorder %s94, %s108
      %p110 = scmp.eq.s32.totalorder %s21, 0
      %p111 = por %p109, %p110
      %s113 = sadd.s32 %s112, 1
      %p116 = scmp.eq.s32.totalorder %s15, 1
      %p117 = scmp.ne.s32.totalorder %s112, %s114
      %p118 = scmp.eq.s32.totalorder %s15, 0
      %p119 = por %p117, %p118
      %p120 = scmp.ne.s32.totalorder %s112, %s114
      %p121 = scmp.eq.s32.totalorder %s20, 1
      %p122 = por %p120, %p121
      %p123 = scmp.ne.s32.totalorder %s114, %s115
      %p124 = scmp.eq.s32.totalorder %s20, 0
      %p125 = por %p123, %p124
      %p126 = scmp.ne.s32.totalorder %s114, %s115
      %p127 = scmp.eq.s32.totalorder %s21, 1
      %p128 = por %p126, %p127
      %p130 = scmp.ne.s32.totalorder %s115, %s129
      %p131 = scmp.eq.s32.totalorder %s21, 0
      %p132 = por %p130, %p131
      %s133 = ssub.s32 %s15, %s22
      %p134 = scmp.eq.s32.totalorder %s133, 0
      %s136 = sadd.s32 %s135, 1
      %s137 = scalar_select %p134, %s135, %s136
      %p140 = pneg %p134
      %p141 = scmp.eq.s32.totalorder %s15, 1
      %p142 = por %p140, %p141
      %p143 = scmp.ne.s32.totalorder %s135, %s138
      %p144 = scmp.eq.s32.totalorder %s15, 0
      %p145 = por %p143, %p144
      %p146 = scmp.ne.s32.totalorder %s135, %s138
      %p147 = scmp.eq.s32.totalorder %s20, 1
      %p148 = por %p146, %p147
      %p149 = scmp.ne.s32.totalorder %s138, %s139
      %p150 = scmp.eq.s32.totalorder %s20, 0
      %p151 = por %p149, %p150
      %p152 = scmp.ne.s32.totalorder %s138, %s139
      %p153 = scmp.eq.s32.totalorder %s21, 1
      %p154 = por %p152, %p153
      %p156 = scmp.ne.s32.totalorder %s139, %s155
      %p157 = scmp.eq.s32.totalorder %s21, 0
      %p158 = por %p156, %p157
      %p159 = scmp.le.s32.totalorder 1, %s15
      %p160 = scmp.lt.s32.totalorder %s15, 3
      %p161 = pnand %p159, %p160
      %p162 = pneg %p161
      // Predicated region
      $region9: #{tpu_custom_call.1} parent=5 // pred_check
        _
      $region10: #{tpu_custom_call.1} parent=5 // pred_check_branch
        %164 = sbr.rel (%p161) target = $region12
      $region11: #{tpu_custom_call.1} parent=5 // pred_region
        %s165 = ssub.s32 %s15, 1
        // Predicated region
        $region13: #{tpu_custom_call.1} parent=11 // pred_check
          %p166 = pneg %p62
        $region14: #{tpu_custom_call.1} parent=11 // pred_check_branch
          %168 = sbr.rel (%p166) target = $region16
        $region15: #{tpu_custom_call.1} parent=11 // pred_region
          %s170 = ssub.s32 128, 128
          %171 = vsyncadd [#allocation3], %s170
          %s173 = sshll.u32 [#allocation2], 4
          %s174 = int_to_ptr.vmem [resolvable:$true] %s173
          %176 = dma.hbm_to_vmem [thread:$0]  %s1, 128, %s174, [#allocation3]
        $region16: #{tpu_custom_call.1} parent=11 // pred_fallthru
          _
        // Predicated region
        $region17: #{tpu_custom_call.1} parent=11 // pred_check
          %p177 = pneg %p83
        $region18: #{tpu_custom_call.1} parent=11 // pred_check_branch
          %179 = sbr.rel (%p177) target = $region20
        $region19: #{tpu_custom_call.1} parent=11 // pred_region
          _
        $region20: #{tpu_custom_call.1} parent=11 // pred_fallthru
          _
        // Predicated region
        $region21: #{tpu_custom_call.1} parent=11 // pred_check
          %p180 = pneg %p104
        $region22: #{tpu_custom_call.1} parent=11 // pred_check_branch
          %182 = sbr.rel (%p180) target = $region24
        $region23: #{tpu_custom_call.1} parent=11 // pred_region
          _
        $region24: #{tpu_custom_call.1} parent=11 // pred_fallthru
          _
        // Predicated region
        $region25: #{tpu_custom_call.1} parent=11 // pred_check
          %p183 = pneg %p125
        $region26: #{tpu_custom_call.1} parent=11 // pred_check_branch
          %185 = sbr.rel (%p183) target = $region28
        $region27: #{tpu_custom_call.1} parent=11 // pred_region
          _
        $region28: #{tpu_custom_call.1} parent=11 // pred_fallthru
          _
      $region12: #{tpu_custom_call.1} parent=5 // pred_fallthru
        _
      %p186 = scmp.lt.s32.totalorder %s15, 2
      // Predicated region
      $region29: #{tpu_custom_call.1} parent=5 // pred_check
        %p187 = pneg %p186
      $region30: #{tpu_custom_call.1} parent=5 // pred_check_branch
        %189 = sbr.rel (%p187) target = $region32
      $region31: #{tpu_custom_call.1} parent=5 // pred_region
        // Predicated region
        $region33: #{tpu_custom_call.1} parent=31 // pred_check
          %p190 = pneg %p35
        $region34: #{tpu_custom_call.1} parent=31 // pred_check_branch
          %192 = sbr.rel (%p190) target = $region36
        $region35: #{tpu_custom_call.1} parent=31 // pred_region
          %p193 = scmp.lt.s32.totalorder %s15, 1
          %s194 = scalar_select %p193, %s15, 1
          %s195 = smul.addr %s194, 8
          %s196 = scalar_lea.vmem %s0, %s195
        $region36: #{tpu_custom_call.1} parent=31 // pred_fallthru
          _
      $region32: #{tpu_custom_call.1} parent=5 // pred_fallthru
        _
      %p197 = scmp.le.s32.totalorder 1, %s15
      %p198 = scmp.lt.s32.totalorder %s15, 3
      %p199 = pnand %p197, %p198
      %p200 = pneg %p199
      // Predicated region
      $region37: #{tpu_custom_call.1} parent=5 // pred_check
        _
      $region38: #{tpu_custom_call.1} parent=5 // pred_check_branch
        %202 = sbr.rel (%p199) target = $region40
      $region39: #{tpu_custom_call.1} parent=5 // pred_region
        %s203 = ssub.s32 %s15, 1
        // Predicated region
        $region41: #{tpu_custom_call.1} parent=39 // pred_check
          %p204 = pneg %p62
        $region42: #{tpu_custom_call.1} parent=39 // pred_check_branch
          %206 = sbr.rel (%p204) target = $region44
        $region43: #{tpu_custom_call.1} parent=39 // pred_region
          %207 = dma.done [#allocation3], 128
        $region44: #{tpu_custom_call.1} parent=39 // pred_fallthru
          _
        %p208 = scmp.lt.s32.totalorder %s20, 1
        %s209 = scalar_select %p208, %s20, 1
        %s210 = smul.addr %s209, 8
        %s211 = scalar_lea.vmem %s0, %s210
        %p212 = pneg %p41
        %p213 = pneg %p38
        %p214 = pneg %p62
        %p215 = pneg %p59
        %p216 = pneg %p83
        %p217 = pneg %p80
        %p218 = pneg %p104
        %p219 = pneg %p101
        %p220 = pneg %p125
        %p221 = pneg %p122
        %p222 = pneg %p151
        %p223 = pneg %p148
        %s224 = sand.u32 %s138, 1
        %s225 = scalar_lea.sflag [#allocation4], %s224
        %s226 = sand.u32 %s138, 1
        %s227 = smul.addr %s226, 8
        %s228 = scalar_lea.vmem [#allocation5], %s227
        %p229 = scmp.lt.s32.totalorder %s20, 1
        %s230 = scalar_select %p229, %s20, 1
        %s231 = smul.addr %s230, 8
        %s232 = scalar_lea.vmem %s0, %s231
        %v233 = vld [vmem:[%s232] sm:$0xff]
        %v234 = vld [vmem:[#allocation2] sm:$0xff]
        %236 = vrot.lane.b32.xlu0 %v233, 3
        %v237 = vpop.permute.xlu0 %236
        %vm239 = vcmask 23552
        %v240 = vsel %vm239, 0.0, %v237
        %241 = vrot.lane.b32.xlu0 %v233, 2
        %v242 = vpop.permute.xlu0 %241
        %vm244 = vcmask 15360
        %v245 = vsel %vm244, 0.0, %v242
        %246 = vrot.lane.b32.xlu0 %v233, 1
        %v247 = vpop.permute.xlu0 %246
        %vm249 = vcmask 7168
        %v250 = vsel %vm249, 0.0, %v247
        %251 = vrot.lane.b32.xlu0 %v233, 127
        %v252 = vpop.permute.xlu0 %251
        %vm254 = vcmask 1039360
        %v255 = vsel %vm254, %v252, 0.0
        %256 = vrot.lane.b32.xlu0 %v233, 126
        %v257 = vpop.permute.xlu0 %256
        %vm259 = vcmask 1031168
        %v260 = vsel %vm259, %v257, 0.0
        %261 = vrot.lane.b32.xlu0 %v233, 125
        %v262 = vpop.permute.xlu0 %261
        %vm264 = vcmask 1022976
        %v265 = vsel %vm264, %v262, 0.0
        %v266 = vld [vmem:[%s3] sm:$0xff]
        %268 = vset.pattern.permute.xlu0 0
        %269 = vperm.xlu0 %268, %v266
        %v270 = vpop.permute.xlu0 %269
        %vm272 = vcmask 457728
        %v274 = vsel %vm272, %v234, 0
        %276 = vmatprep.subr.mxu0 0.0
        %277 = vmatpush1.msra.mxu0 %v240
        %278 = vmatprep.subr.mxu0 0.0
        %279 = vmatpush1.msra.mxu0 %v245
        %280 = vmatprep.subr.mxu0 0.0
        %281 = vmatpush1.msra.mxu0 %v250
        %282 = vmatprep.subr.mxu0 0.0
        %283 = vmatpush1.msra.mxu0 %v233
        %284 = vmatprep.subr.mxu0 0.0
        %285 = vmatpush1.msra.mxu0 %v255
        %286 = vmatprep.subr.mxu0 0.0
        %287 = vmatpush1.msra.mxu0 %v260
        %288 = vmatprep.subr.mxu0 0.0
        %289 = vmatpush1.msra.mxu0 %v265
        %290 = vmatprep.subr.mxu0 0.0
        %291 = vmatpush1.msra.mxu0 0.0
        %292 = vmatprep.subr.mxu0 0.0
        %293 = vmatpush1.msra.mxu0 0.0
        %294 = vmatprep.subr.mxu0 0.0
        %295 = vmatpush1.msra.mxu0 0.0
        %296 = vmatprep.subr.mxu0 0.0
        %297 = vmatpush1.msra.mxu0 0.0
        %298 = vmatprep.subr.mxu0 0.0
        %299 = vmatpush1.msra.mxu0 0.0
        %300 = vmatprep.subr.mxu0 0.0
        %301 = vmatpush1.msra.mxu0 0.0
        %302 = vmatprep.subr.mxu0 0.0
        %303 = vmatpush1.msra.mxu0 0.0
        %304 = vmatprep.subr.mxu0 0.0
        %305 = vmatpush1.msra.mxu0 0.0
        %306 = vmatprep.subr.mxu0 0.0
        %307 = vmatpush1.msra.mxu0 0.0
        %308 = vmatprep.subr.mxu0 0.0
        %309 = vmatpush1.msra.mxu0 0.0
        %310 = vmatprep.subr.mxu0 0.0
        %311 = vmatpush1.msra.mxu0 0.0
        %312 = vmatprep.subr.mxu0 0.0
        %313 = vmatpush1.msra.mxu0 0.0
        %314 = vmatprep.subr.mxu0 0.0
        %315 = vmatpush1.msra.mxu0 0.0
        %316 = vmatprep.subr.mxu0 0.0
        %317 = vmatpush1.msra.mxu0 0.0
        %318 = vmatprep.subr.mxu0 0.0
        %319 = vmatpush1.msra.mxu0 0.0
        %320 = vmatprep.subr.mxu0 0.0
        %321 = vmatpush1.msra.mxu0 0.0
        %322 = vmatprep.subr.mxu0 0.0
        %323 = vmatpush1.msra.mxu0 0.0
        %324 = vmatprep.subr.mxu0 0.0
        %325 = vmatpush1.msra.mxu0 0.0
        %326 = vmatprep.subr.mxu0 0.0
        %327 = vmatpush1.msra.mxu0 0.0
        %328 = vmatprep.subr.mxu0 0.0
        %329 = vmatpush1.msra.mxu0 0.0
        %330 = vmatprep.subr.mxu0 0.0
        %331 = vmatpush1.msra.mxu0 0.0
        %332 = vmatprep.subr.mxu0 0.0
        %333 = vmatpush1.msra.mxu0 0.0
        %334 = vmatprep.subr.mxu0 0.0
        %335 = vmatpush1.msra.mxu0 0.0
        %336 = vmatprep.subr.mxu0 0.0
        %337 = vmatpush1.msra.mxu0 0.0
        %338 = vmatprep.subr.mxu0 0.0
        %339 = vmatpush1.msra.mxu0 0.0
        %340 = vmatprep.mubr.f32.mxu0 0.0
        %341 = vmatmul.mubr.f32.gmra.mrb[0].mxu0 %v274
        %v342 = vpop.f32.mrb[0].mxu0
        %v343 = vadd.f32 %v270, %v342
        %v344 = vpop.f32.mrb[0].mxu0
        %345 = vdwg.mxu0
        %v346 = vmax.f32 %v343, 0.0
        %v347 = vld [vmem:[%s2] sm:$0xff]
        %349 = vrot.lane.b32.xlu0 %v346, 3
        %v350 = vpop.permute.xlu0 %349
        %v352 = vsel %vm239, 0.0, %v350
        %353 = vrot.lane.b32.xlu0 %v346, 2
        %v354 = vpop.permute.xlu0 %353
        %v356 = vsel %vm244, 0.0, %v354
        %357 = vrot.lane.b32.xlu0 %v346, 1
        %v358 = vpop.permute.xlu0 %357
        %v360 = vsel %vm249, 0.0, %v358
        %361 = vrot.lane.b32.xlu0 %v346, 127
        %v362 = vpop.permute.xlu0 %361
        %v364 = vsel %vm254, %v362, 0.0
        %365 = vrot.lane.b32.xlu0 %v346, 126
        %v366 = vpop.permute.xlu0 %365
        %v368 = vsel %vm259, %v366, 0.0
        %369 = vrot.lane.b32.xlu0 %v346, 125
        %v370 = vpop.permute.xlu0 %369
        %v372 = vsel %vm264, %v370, 0.0
        %v373 = vld [vmem:[%s4] sm:$0xff]
        %375 = vset.pattern.permute.xlu0 0
        %376 = vperm.xlu0 %375, %v373
        %v377 = vpop.permute.xlu0 %376
        %v380 = vsel %vm272, %v347, 0
        %382 = vmatprep.subr.mxu0 0.0
        %383 = vmatpush1.msra.mxu0 %v352
        %384 = vmatprep.subr.mxu0 0.0
        %385 = vmatpush1.msra.mxu0 %v356
        %386 = vmatprep.subr.mxu0 0.0
        %387 = vmatpush1.msra.mxu0 %v360
        %388 = vmatprep.subr.mxu0 0.0
        %389 = vmatpush1.msra.mxu0 %v346
        %390 = vmatprep.subr.mxu0 0.0
        %391 = vmatpush1.msra.mxu0 %v364
        %392 = vmatprep.subr.mxu0 0.0
        %393 = vmatpush1.msra.mxu0 %v368
        %394 = vmatprep.subr.mxu0 0.0
        %395 = vmatpush1.msra.mxu0 %v372
        %396 = vmatprep.subr.mxu0 0.0
        %397 = vmatpush1.msra.mxu0 0.0
        %398 = vmatprep.subr.mxu0 0.0
        %399 = vmatpush1.msra.mxu0 0.0
        %400 = vmatprep.subr.mxu0 0.0
        %401 = vmatpush1.msra.mxu0 0.0
        %402 = vmatprep.subr.mxu0 0.0
        %403 = vmatpush1.msra.mxu0 0.0
        %404 = vmatprep.subr.mxu0 0.0
        %405 = vmatpush1.msra.mxu0 0.0
        %406 = vmatprep.subr.mxu0 0.0
        %407 = vmatpush1.msra.mxu0 0.0
        %408 = vmatprep.subr.mxu0 0.0
        %409 = vmatpush1.msra.mxu0 0.0
        %410 = vmatprep.subr.mxu0 0.0
        %411 = vmatpush1.msra.mxu0 0.0
        %412 = vmatprep.subr.mxu0 0.0
        %413 = vmatpush1.msra.mxu0 0.0
        %414 = vmatprep.subr.mxu0 0.0
        %415 = vmatpush1.msra.mxu0 0.0
        %416 = vmatprep.subr.mxu0 0.0
        %417 = vmatpush1.msra.mxu0 0.0
        %418 = vmatprep.subr.mxu0 0.0
        %419 = vmatpush1.msra.mxu0 0.0
        %420 = vmatprep.subr.mxu0 0.0
        %421 = vmatpush1.msra.mxu0 0.0
        %422 = vmatprep.subr.mxu0 0.0
        %423 = vmatpush1.msra.mxu0 0.0
        %424 = vmatprep.subr.mxu0 0.0
        %425 = vmatpush1.msra.mxu0 0.0
        %426 = vmatprep.subr.mxu0 0.0
        %427 = vmatpush1.msra.mxu0 0.0
        %428 = vmatprep.subr.mxu0 0.0
        %429 = vmatpush1.msra.mxu0 0.0
        %430 = vmatprep.subr.mxu0 0.0
        %431 = vmatpush1.msra.mxu0 0.0
        %432 = vmatprep.subr.mxu0 0.0
        %433 = vmatpush1.msra.mxu0 0.0
        %434 = vmatprep.subr.mxu0 0.0
        %435 = vmatpush1.msra.mxu0 0.0
        %436 = vmatprep.subr.mxu0 0.0
        %437 = vmatpush1.msra.mxu0 0.0
        %438 = vmatprep.subr.mxu0 0.0
        %439 = vmatpush1.msra.mxu0 0.0
        %440 = vmatprep.subr.mxu0 0.0
        %441 = vmatpush1.msra.mxu0 0.0
        %442 = vmatprep.subr.mxu0 0.0
        %443 = vmatpush1.msra.mxu0 0.0
        %444 = vmatprep.subr.mxu0 0.0
        %445 = vmatpush1.msra.mxu0 0.0
        %446 = vmatprep.mubr.f32.mxu0 0.0
        %447 = vmatmul.mubr.f32.gmra.mrb[0].mxu0 %v380
        %v448 = vpop.f32.mrb[0].mxu0
        %v449 = vadd.f32 %v377, %v448
        %v450 = vpop.f32.mrb[0].mxu0
        %451 = vdwg.mxu0
        %v452 = vadd.f32 %v449, %v233
        %v453 = vmax.f32 %v452, 0.0
        %454 = vst [vmem:[%s228] sm:$0xff] %v453
        %s455 = sand.u32 %s138, 1
        %s456 = scalar_lea.sflag [#allocation4], %s455
        %s457 = sand.u32 %s138, 1
        %s458 = smul.addr %s457, 8
        %s459 = scalar_lea.vmem [#allocation5], %s458
        // Predicated region
        $region45: #{tpu_custom_call.1} parent=39 // pred_check
          %p460 = pneg %p148
        $region46: #{tpu_custom_call.1} parent=39 // pred_check_branch
          %462 = sbr.rel (%p460) target = $region48
        $region47: #{tpu_custom_call.1} parent=39 // pred_region
          %s464 = ssub.s32 128, 128
          %465 = vsyncadd %s456, %s464
          %s466 = smul.addr %s20, 128
          %s467 = scalar_lea.hbm %s5, %s466
          %s469 = sshll.u32 %s459, 4
          %s470 = int_to_ptr.vmem [resolvable:$true] %s469
          %472 = dma.vmem_to_hbm [thread:$0]  %s470, 128, %s467, %s456
        $region48: #{tpu_custom_call.1} parent=39 // pred_fallthru
          _
      $region40: #{tpu_custom_call.1} parent=5 // pred_fallthru
        _
      %p473 = scmp.le.s32.totalorder 2, %s15
      // Predicated region
      $region49: #{tpu_custom_call.1} parent=5 // pred_check
        %p474 = pneg %p473
      $region50: #{tpu_custom_call.1} parent=5 // pred_check_branch
        %476 = sbr.rel (%p474) target = $region52
      $region51: #{tpu_custom_call.1} parent=5 // pred_region
        %s477 = ssub.s32 %s15, 2
        // Predicated region
        $region53: #{tpu_custom_call.1} parent=51 // pred_check
          %p478 = pneg %p154
        $region54: #{tpu_custom_call.1} parent=51 // pred_check_branch
          %480 = sbr.rel (%p478) target = $region56
        $region55: #{tpu_custom_call.1} parent=51 // pred_region
          %s481 = sand.u32 %s139, 1
          %s482 = scalar_lea.sflag [#allocation4], %s481
          %s483 = sand.u32 %s139, 1
          %s484 = smul.addr %s483, 8
          %s485 = scalar_lea.vmem [#allocation5], %s484
          %486 = dma.done %s482, 128
        $region56: #{tpu_custom_call.1} parent=51 // pred_fallthru
          _
      $region52: #{tpu_custom_call.1} parent=5 // pred_fallthru
        _
    $region6: #{tpu_custom_call.1} parent=1 // loop_footer
      %s19 = sadd.s32 1, %s15
    $region7: #{tpu_custom_call.1} parent=1 // loop_footer_branch
      %14 = sbr.rel target = $region3
    $region8: #{tpu_custom_call.1} parent=1 // loop_exit
      _
    %487 = vsyncpa [#allocation3], 1
    %s488 = scalar_lea.sflag [#allocation3], 1
    %489 = vsyncpa %s488, 1
    %490 = vsyncpa [#allocation4], 1
    %s491 = scalar_lea.sflag [#allocation4], 1
    %492 = vsyncpa %s491, 1

</llo_original>
